<compile_context>
chip_gen: v6e
topology: v6e:2x2x1
jax: 0.10.0
libtpu: 0.0.40
codegen_flags: <defaults>
</compile_context>

<pallas_src>
import functools

import jax
import jax.numpy as jnp
from jax.experimental import pallas as pl
from jax.experimental.pallas import tpu as pltpu


def _round_up(x, m):
    return ((x + m - 1) // m) * m


def _round_down(x, m):
    return (x // m) * m


# Cap the unrolled per-step lane fold (128 groups -> block_hw <= 16384 cols).
_MAX_LANE_GROUPS = 128


def _gap_kernel(x_ref, o_ref, acc_ref, *, inv_hw, block_hw, hw, needs_mask):
    # x_ref: (block_rows, block_hw) input tile (original dtype)
    # o_ref: (block_rows, 1) output tile, resident across the hw grid axis
    # acc_ref: (block_rows, 128) f32 scratch, resident across the hw grid axis
    k = pl.program_id(1)

    @pl.when(k == 0)
    def _init():
        acc_ref[...] = jnp.zeros_like(acc_ref)

    # f32 accumulation regardless of input dtype.
    x = x_ref[...].astype(jnp.float32)

    if needs_mask:  # static: only generated when HW does not tile evenly
        col = jax.lax.broadcasted_iota(jnp.int32, x.shape, 1) + k * block_hw
        x = jnp.where(col < hw, x, 0.0)

    n_groups = block_hw // 128
    if n_groups == 0:
        # Tiny-HW fallback (hw < 128): block is the full, un-tiled HW extent.
        acc_ref[:, 0:1] += jnp.sum(x, axis=-1, keepdims=True)
    else:
        # Fold 128-lane groups with pure VPU adds (slices are lane-tile
        # aligned); cross-lane XLU reduce deferred to finalize.
        folded = x[:, 0:128]
        for g in range(1, n_groups):
            folded = folded + x[:, g * 128:(g + 1) * 128]
        acc_ref[...] += folded

    @pl.when(k == pl.num_programs(1) - 1)
    def _finalize():
        row_sum = jnp.sum(acc_ref[...], axis=-1, keepdims=True)
        o_ref[...] = (row_sum * inv_hw).astype(o_ref.dtype)


def global_avg_pool_2d(x, *, block_bytes=8 * 1024 * 1024):
    """x: (N, C, H, W) -> (N, C), mean over H*W (matches GlobalAvgPool2d)."""
    n, c, h, w = x.shape
    hw = h * w
    rows = n * c
    x_flat = x.reshape(rows, hw)

    itemsize = jnp.dtype(x.dtype).itemsize
    pack = 8 * max(1, 4 // itemsize)          # sublane pack: 8 f32, 16 bf16, 32 i8
    elems_budget = max(block_bytes // itemsize, pack * 128)

    # Lane (HW) tiling: multiple of 128, covering HW in one chunk when it fits.
    hw_ceil = _round_up(hw, 128)
    block_hw = min(hw_ceil,
                   _MAX_LANE_GROUPS * 128,
                   max(_round_down(elems_budget // pack, 128), 128))
    if hw < 128:
        block_hw = hw                          # full-extent lane block (legal)
    num_k = pl.cdiv(hw, block_hw)
    needs_mask = (hw % block_hw) != 0

    # Row (sublane) tiling: multiple of the dtype pack, byte-budget sized.
    rows_ceil = _round_up(rows, pack)
    block_rows = min(rows_ceil,
                     max(_round_down(elems_budget // block_hw, pack), pack))
    if rows < pack:
        block_rows = rows                      # full-extent row block (legal)
    # v7x megacore: keep >= 2 tiles along the 'parallel' rows axis if possible.
    if block_rows >= rows_ceil and rows_ceil > pack:
        block_rows = _round_up(rows_ceil // 2, pack)
    row_tiles = pl.cdiv(rows, block_rows)

    # Double-buffered input + f32 accumulator + (lane-padded) output buffers.
    vmem_needed = (2 * block_rows * block_hw * itemsize
                   + 3 * block_rows * 128 * 4)
    vmem_limit = min(max(int(1.5 * vmem_needed) + (2 << 20), 32 << 20), 64 << 20)

    kernel = functools.partial(_gap_kernel, inv_hw=1.0 / hw, block_hw=block_hw,
                               hw=hw, needs_mask=needs_mask)

    out = pl.pallas_call(
        kernel,
        out_shape=jax.ShapeDtypeStruct((rows, 1), x.dtype),
        grid_spec=pltpu.PrefetchScalarGridSpec(
            num_scalar_prefetch=0,
            grid=(row_tiles, num_k),
            in_specs=[pl.BlockSpec((block_rows, block_hw), lambda i, k: (i, k))],
            out_specs=pl.BlockSpec((block_rows, 1), lambda i, k: (i, 0)),
            scratch_shapes=[pltpu.VMEM((block_rows, 128), jnp.float32)],
        ),
        compiler_params=pltpu.CompilerParams(
            dimension_semantics=("parallel", "arbitrary"),
            vmem_limit_bytes=vmem_limit,
        ),
    )(x_flat)

    return out[:, 0].reshape(n, c)


if __name__ == "__main__":
    key = jax.random.PRNGKey(0)

    # Primary small test, NCHW as the module expects.
    x = jax.random.normal(key, (2, 4, 16, 16), dtype=jnp.float32)
    out = jax.block_until_ready(global_avg_pool_2d(x))
    ref = jnp.mean(x.reshape(2, 4, -1), axis=2)
    assert out.shape == (2, 4)
    assert jnp.allclose(out, ref, atol=1e-5, rtol=1e-5)

    # Unaligned HW (50*50=2500): ragged chunk + in-kernel column mask, and
    # rows=16 -> 2 row tiles (megacore split path). No jnp.pad anywhere.
    x2 = jax.random.normal(jax.random.PRNGKey(1), (2, 8, 50, 50), dtype=jnp.float32)
    out2 = jax.block_until_ready(global_avg_pool_2d(x2))
    ref2 = jnp.mean(x2.reshape(2, 8, -1), axis=2)
    assert out2.shape == (2, 8)
    assert jnp.allclose(out2, ref2, atol=1e-5, rtol=1e-5)

    # Force multi-step HW accumulation with a ragged final chunk (tiny block
    # byte budget) to exercise the accumulator carry + boundary mask.
    x3 = jax.random.normal(jax.random.PRNGKey(2), (1, 8, 40, 40), dtype=jnp.float32)
    out3 = jax.block_until_ready(global_avg_pool_2d(x3, block_bytes=16 * 1024))
    ref3 = jnp.mean(x3.reshape(1, 8, -1), axis=2)
    assert jnp.allclose(out3, ref3, atol=1e-5, rtol=1e-5)

    # bf16 path: dtype-pack row rounding (16) + f32 in-kernel accumulation.
    x4 = jax.random.normal(jax.random.PRNGKey(3), (2, 16, 24, 24), dtype=jnp.bfloat16)
    out4 = jax.block_until_ready(global_avg_pool_2d(x4))
    ref4 = jnp.mean(x4.astype(jnp.float32).reshape(2, 16, -1), axis=2)
    assert jnp.allclose(out4.astype(jnp.float32), ref4, atol=2e-2, rtol=2e-2)

    print("KERNEL_OK")
</pallas_src>

<mosaic_0001>
module attributes {stable_mosaic.version = 11 : i64} {
  func.func @_gap_kernel(%arg0: i32, %arg1: i32, %arg2: memref<8x256xf32, #tpu.memory_space<vmem>>, %arg3: memref<8x1xf32, #tpu.memory_space<vmem>>, %arg4: memref<8x128xf32, #tpu.memory_space<vmem>>) attributes {dimension_semantics = [#tpu.dimension_semantics<parallel>, #tpu.dimension_semantics<arbitrary>], iteration_bounds = array<i64: 1, 1>, scalar_prefetch = 0 : i64, scratch_operands = 1 : i64, tpu.core_type = #tpu.core_type<tc>, window_params = [{transform_indices = @transform_0, window_bounds = array<i64: 8, 256>}, {transform_indices = @transform_1, window_bounds = array<i64: 8, 1>}]} {
    %c0_i32 = arith.constant 0 : i32
    %0 = arith.cmpi eq, %arg1, %c0_i32 : i32
    %1 = arith.extui %0 : i1 to i32
    %c0_i32_0 = arith.constant 0 : i32
    %2 = arith.cmpi ne, %1, %c0_i32_0 : i32
    scf.if %2 {
      %cst = arith.constant 0.000000e+00 : f32
      %13 = vector.broadcast %cst : f32 to vector<8x128xf32>
      %c0_8 = arith.constant 0 : index
      %c0_9 = arith.constant 0 : index
      %14 = vector.load %arg4[%c0_8, %c0_9] : memref<8x128xf32, #tpu.memory_space<vmem>>, vector<8x128xf32>
      tpu.vector_store %arg4[%c0_8, %c0_9], %13 {strides = array<i32>} : memref<8x128xf32, #tpu.memory_space<vmem>>, vector<8x128xf32>,
    } else {
    }
    %c0 = arith.constant 0 : index
    %c0_1 = arith.constant 0 : index
    %3 = vector.load %arg2[%c0, %c0_1] : memref<8x256xf32, #tpu.memory_space<vmem>>, vector<8x256xf32>
    %4 = vector.extract_strided_slice %3 {offsets = [0, 0], sizes = [8, 128], strides = [1, 1]} : vector<8x256xf32> to vector<8x128xf32>
    %5 = vector.extract_strided_slice %3 {offsets = [0, 128], sizes = [8, 128], strides = [1, 1]} : vector<8x256xf32> to vector<8x128xf32>
    %6 = arith.addf %4, %5 : vector<8x128xf32>
    %c0_2 = arith.constant 0 : index
    %c0_3 = arith.constant 0 : index
    %7 = vector.load %arg4[%c0_2, %c0_3] : memref<8x128xf32, #tpu.memory_space<vmem>>, vector<8x128xf32>
    %8 = arith.addf %7, %6 : vector<8x128xf32>
    %c0_4 = arith.constant 0 : index
    %c0_5 = arith.constant 0 : index
    %9 = vector.load %arg4[%c0_4, %c0_5] : memref<8x128xf32, #tpu.memory_space<vmem>>, vector<8x128xf32>
    tpu.vector_store %arg4[%c0_4, %c0_5], %8 {strides = array<i32>} : memref<8x128xf32, #tpu.memory_space<vmem>>, vector<8x128xf32>,
    %c0_i32_6 = arith.constant 0 : i32
    %10 = arith.cmpi eq, %arg1, %c0_i32_6 : i32
    %11 = arith.extui %10 : i1 to i32
    %c0_i32_7 = arith.constant 0 : i32
    %12 = arith.cmpi ne, %11, %c0_i32_7 : i32
    scf.if %12 {
      %c0_8 = arith.constant 0 : index
      %c0_9 = arith.constant 0 : index
      %13 = vector.load %arg4[%c0_8, %c0_9] : memref<8x128xf32, #tpu.memory_space<vmem>>, vector<8x128xf32>
      %cst = arith.constant dense<0.000000e+00> : vector<8xf32>
      %14 = vector.multi_reduction <add>, %13, %cst [1] : vector<8x128xf32> to vector<8xf32>
      %15 = vector.shape_cast %14 : vector<8xf32> to vector<8x1xf32>
      %cst_10 = arith.constant 3.906250e-03 : f32
      %16 = vector.broadcast %cst_10 : f32 to vector<8x1xf32>
      %17 = arith.mulf %15, %16 : vector<8x1xf32>
      %c0_11 = arith.constant 0 : index
      %c0_12 = arith.constant 0 : index
      %18 = vector.load %arg3[%c0_11, %c0_12] : memref<8x1xf32, #tpu.memory_space<vmem>>, vector<8x1xf32>
      tpu.vector_store %arg3[%c0_11, %c0_12], %17 {strides = array<i32>} : memref<8x1xf32, #tpu.memory_space<vmem>>, vector<8x1xf32>,
    } else {
    }
    return
  }
  func.func @transform_0(%arg0: i32, %arg1: i32) -> (i32, i32) {
    %c0_i32 = arith.constant 0 : i32
    return %arg0, %arg1 : i32, i32
  }
  func.func @transform_1(%arg0: i32, %arg1: i32) -> (i32, i32) {
    %c0_i32 = arith.constant 0 : i32
    %c0_i32_0 = arith.constant 0 : i32
    return %arg0, %c0_i32 : i32, i32
  }
}

</mosaic_0001>

<llo_original>
// kernel: tpu_custom_call.1
$region0: #{tpu_custom_call.1}
  #allocation0 [shape = 'u32[]', space=smem, size = 0x4, offset = 0x4, fixed_abs, tag = 'smem constant byte address 0x4 - core index']
  #allocation1 [shape = 'u32[144,128]{1,0:T(1,128)}', space=vmem, size = 0x12000, scoped, tag = 'internal scratch']
  #allocation2 [shape = 'f32[8,128]{1,0:T(8,128)}', space=vmem, size = 0x1000, scoped, tag = 'scratch operand']
  %s0 = inlined_call_operand.hbm [shape: f32[8,256], index: 0, kind: input, shape index: {}]
  %s1 = inlined_call_operand.vmem [shape: f32[8,1], index: 1, kind: output, shape index: {}]
  %s2 = sld [smem:[#allocation0]]
  $region26: #{tpu_custom_call.1} parent=0
    _
  %s4 = ssub.s32 1, %s2
  %s5 = scalar_select 0, %s4, %s2
  $region1: #{tpu_custom_call.1} parent=0
    #allocation3 [shape = 'u8[8192]{0}', space=vmem, size = 0x2000, scoped, tag = 'input window, operand 0, single buffered']
    #allocation4 [shape = 's32[1]{0}', space=sflag, size = 0x4, scoped, tag = 'scoped memory for tpu_custom_call.1']
    %6 = vsyncpa [#allocation4], 0
    // Predicated region
    $region2: #{tpu_custom_call.1} parent=1 // pred_check
      _
    $region3: #{tpu_custom_call.1} parent=1 // pred_check_branch
      %8 = sbr.rel (0) target = $region5
    $region4: #{tpu_custom_call.1} parent=1 // pred_region
      %s10 = ssub.s32 256, 256
      %11 = vsyncadd [#allocation4], %s10
      %s13 = sshll.u32 [#allocation3], 4
      %s14 = int_to_ptr.vmem [resolvable:$true] %s13
      %16 = dma.hbm_to_vmem [thread:$0]  %s0, 256, %s14, [#allocation4]
    $region5: #{tpu_custom_call.1} parent=1 // pred_fallthru
      _
    // Predicated region
    $region6: #{tpu_custom_call.1} parent=1 // pred_check
      _
    $region7: #{tpu_custom_call.1} parent=1 // pred_check_branch
      %18 = sbr.rel (0) target = $region9
    $region8: #{tpu_custom_call.1} parent=1 // pred_region
      %19 = dma.done [#allocation4], 256
    $region9: #{tpu_custom_call.1} parent=1 // pred_fallthru
      _
    %p20 = scmp.eq.s32.totalorder 0, 0
    // Predicated region
    $region10: #{tpu_custom_call.1} parent=1 // pred_check
      %p21 = pneg %p20
    $region11: #{tpu_custom_call.1} parent=1 // pred_check_branch
      %23 = sbr.rel (%p21) target = $region13
    $region12: #{tpu_custom_call.1} parent=1 // pred_region
      %24 = vst [vmem:[#allocation2] sm:$0xff] 0.0
    $region13: #{tpu_custom_call.1} parent=1 // pred_fallthru
      _
    %v25 = vld [vmem:[#allocation3] sm:$0xff]
    %v26 = vld [vmem:[#allocation3 + $0x8] sm:$0xff]
    %v27 = vadd.f32 %v25, %v26
    %v28 = vld [vmem:[#allocation2] sm:$0xff]
    %v29 = vadd.f32 %v28, %v27
    %30 = vst [vmem:[#allocation2] sm:$0xff] %v29
    // Predicated region
    $region14: #{tpu_custom_call.1} parent=1 // pred_check
      %p31 = pneg %p20
    $region15: #{tpu_custom_call.1} parent=1 // pred_check_branch
      %33 = sbr.rel (%p31) target = $region17
    $region16: #{tpu_custom_call.1} parent=1 // pred_region
      %v34 = vld [vmem:[#allocation2] sm:$0xff]
      %35 = vadd.xlane.f32.xlu0 %v34
      %v36 = vpop.xlane.xlu0 %35
      %v37 = vmul.f32 %v36, 0.00390625
      %vm38 = vcmask 7168
      %39 = vst.msk [vmem:[%s1] sm:$0xff] %vm38, %v37
    $region17: #{tpu_custom_call.1} parent=1 // pred_fallthru
      _
    // Predicated region
    $region18: #{tpu_custom_call.1} parent=1 // pred_check
      _
    $region19: #{tpu_custom_call.1} parent=1 // pred_check_branch
      %41 = sbr.rel (0) target = $region21
    $region20: #{tpu_custom_call.1} parent=1 // pred_region
      _
    $region21: #{tpu_custom_call.1} parent=1 // pred_fallthru
      _
    // Predicated region
    $region22: #{tpu_custom_call.1} parent=1 // pred_check
      _
    $region23: #{tpu_custom_call.1} parent=1 // pred_check_branch
      %43 = sbr.rel (0) target = $region25
    $region24: #{tpu_custom_call.1} parent=1 // pred_region
      _
    $region25: #{tpu_custom_call.1} parent=1 // pred_fallthru
      _
    %44 = vsyncpa [#allocation4], 1

</llo_original>
